<compile_context>
chip_gen: v5e
topology: v5e:2x2
jax: 0.10.0
libtpu: 0.0.40
codegen_flags: <defaults>
</compile_context>

<pallas_src>
import jax
import jax.numpy as jnp
from jax.experimental import pallas as pl
from jax.experimental.pallas import tpu as pltpu


def _square_kernel(x_ref, o_ref):
    x = x_ref[...]
    o_ref[...] = x * x


# Candidate lane widths (largest first); all multiples of 128.
_LANE_WIDTHS = (4096, 2048, 1024, 512, 256, 128)
# ~2 MiB per block -> ~8 MiB VMEM with double-buffered input+output.
_TARGET_BLOCK_BYTES = 2 * 1024 * 1024


@jax.jit
def squared_activation(x: jax.Array) -> jax.Array:
    """Elementwise square via a Pallas TPU kernel. Matches torch.square(x)."""
    orig_shape = x.shape
    n = x.size
    if n == 0:
        return x * x  # degenerate empty tensor; nothing for the kernel to do

    itemsize = jnp.dtype(x.dtype).itemsize
    flat = x.reshape(-1)

    # ---- choose a lane-dense (rows, cols) view, cols a multiple of 128 ----
    cols = None
    for c in _LANE_WIDTHS:          # prefer full sublane usage too (rows >= 8)
        if n % c == 0 and n // c >= 8:
            cols = c
            break
    if cols is None:
        for c in _LANE_WIDTHS:
            if n % c == 0:
                cols = c
                break

    if cols is not None:
        rows = n // cols
        x2d = flat.reshape(rows, cols)
        # Row block: ~_TARGET_BLOCK_BYTES, multiple of 32 sublanes (legal for
        # f32 / bf16 / int8-fp8 tilings), or the full row extent if smaller.
        tr = _TARGET_BLOCK_BYTES // (cols * itemsize)
        tr = max(32, (tr // 32) * 32)
        tr = min(tr, rows)
        grid = (pl.cdiv(rows, tr),)
        block = (tr, cols)
        index_map = lambda i: (i, 0)
    else:
        # N not a multiple of 128 (odd sizes / tiny tensors): single-row view,
        # tile the lane axis; ragged last block is masked by Pallas.
        rows, cols = 1, n
        x2d = flat.reshape(rows, cols)
        if cols < 128:
            tc = cols
        else:
            # (1, tc) tiles are sublane-padded 8x in VMEM -> shrink nominal size.
            tc = _TARGET_BLOCK_BYTES // (8 * itemsize)
            tc = min(tc, cols)
            tc = max(128, (tc // 128) * 128)
        grid = (pl.cdiv(cols, tc),)
        block = (1, tc)
        index_map = lambda i: (0, i)

    # TODO(synk): if callers never reuse x, add input_output_aliases={0: 0} to
    # drop the separate output allocation (halves HBM footprint, not bandwidth).
    out2d = pl.pallas_call(
        _square_kernel,
        out_shape=jax.ShapeDtypeStruct((rows, cols), x.dtype),
        grid_spec=pltpu.PrefetchScalarGridSpec(
            num_scalar_prefetch=0,
            grid=grid,
            in_specs=[pl.BlockSpec(block, index_map)],
            out_specs=pl.BlockSpec(block, index_map),
        ),
        compiler_params=pltpu.CompilerParams(
            dimension_semantics=("parallel",),
        ),
        cost_estimate=pl.CostEstimate(
            flops=n, transcendentals=0, bytes_accessed=2 * n * itemsize),
    )(x2d)

    return out2d.reshape(orig_shape)


if __name__ == "__main__":
    key = jax.random.PRNGKey(0)
    # NCHW-style input consistent with a conv-net activation: (B=2, C=4, H=16, W=16)
    x = jax.random.normal(key, (2, 4, 16, 16), dtype=jnp.float32)

    out = squared_activation(x)
    out = jax.block_until_ready(out)

    ref = x * x
    assert out.shape == ref.shape and out.dtype == ref.dtype
    assert jnp.allclose(out, ref, atol=0.0, rtol=0.0)

    # Also exercise an odd-sized shape that takes the fallback (non-128-divisible) path.
    y = jax.random.normal(jax.random.PRNGKey(1), (3, 5, 7), dtype=jnp.float32)
    out_y = jax.block_until_ready(squared_activation(y))
    assert jnp.allclose(out_y, y * y, atol=0.0, rtol=0.0)

    print("KERNEL_OK")
</pallas_src>

<mosaic_0001>
module attributes {stable_mosaic.version = 11 : i64} {
  func.func @_square_kernel(%arg0: i32, %arg1: memref<8x256xf32, #tpu.memory_space<vmem>>, %arg2: memref<8x256xf32, #tpu.memory_space<vmem>>) attributes {dimension_semantics = [#tpu.dimension_semantics<parallel>], iteration_bounds = array<i64: 1>, scalar_prefetch = 0 : i64, scratch_operands = 0 : i64, tpu.core_type = #tpu.core_type<tc>, window_params = [{transform_indices = @transform_0, window_bounds = array<i64: 8, 256>}, {transform_indices = @transform_1, window_bounds = array<i64: 8, 256>}]} {
    %c0 = arith.constant 0 : index
    %c0_0 = arith.constant 0 : index
    %0 = vector.load %arg1[%c0, %c0_0] : memref<8x256xf32, #tpu.memory_space<vmem>>, vector<8x256xf32>
    %1 = arith.mulf %0, %0 : vector<8x256xf32>
    %c0_1 = arith.constant 0 : index
    %c0_2 = arith.constant 0 : index
    %2 = vector.load %arg2[%c0_1, %c0_2] : memref<8x256xf32, #tpu.memory_space<vmem>>, vector<8x256xf32>
    tpu.vector_store %arg2[%c0_1, %c0_2], %1 {strides = array<i32>} : memref<8x256xf32, #tpu.memory_space<vmem>>, vector<8x256xf32>,
    return
  }
  func.func @transform_0(%arg0: i32) -> (i32, i32) {
    %c0_i32 = arith.constant 0 : i32
    %c0_i32_0 = arith.constant 0 : i32
    return %arg0, %c0_i32 : i32, i32
  }
  func.func @transform_1(%arg0: i32) -> (i32, i32) {
    %c0_i32 = arith.constant 0 : i32
    %c0_i32_0 = arith.constant 0 : i32
    return %arg0, %c0_i32 : i32, i32
  }
}

</mosaic_0001>

<llo_original>
// kernel: squared_activation.1
$region0: #{squared_activation.1}
  #allocation0 [shape = 'u32[]', space=smem, size = 0x4, offset = 0x4, fixed_abs, tag = 'smem constant byte address 0x4 - core index']
  #allocation1 [shape = 'u32[72,128]{1,0:T(1,128)}', space=vmem, size = 0x9000, scoped, tag = 'internal scratch']
  %s0 = inlined_call_operand.vmem [shape: f32[8,256], index: 0, kind: input, shape index: {}]
  %s1 = inlined_call_operand.vmem [shape: f32[8,256], index: 1, kind: output, shape index: {}]
  %s2 = sld [smem:[#allocation0]]
  $region14: #{squared_activation.1} parent=0
    _
  %s4 = ssub.s32 1, %s2
  %s5 = scalar_select 0, %s4, %s2
  // Predicated region
  $region2: #{squared_activation.1} parent=0 // pred_check
    _
  $region3: #{squared_activation.1} parent=0 // pred_check_branch
    %7 = sbr.rel (0) target = $region5
  $region4: #{squared_activation.1} parent=0 // pred_region
    _
  $region5: #{squared_activation.1} parent=0 // pred_fallthru
    _
  %v8 = vld [vmem:[%s0] sm:$0xff]
  %v9 = vld [vmem:[%s0 + $0x8] sm:$0xff]
  %v10 = vmul.f32 %v8, %v8
  %v11 = vmul.f32 %v9, %v9
  %12 = vst [vmem:[%s1] sm:$0xff] %v10
  %13 = vst [vmem:[%s1 + $0x8] sm:$0xff] %v11
  // Predicated region
  $region6: #{squared_activation.1} parent=0 // pred_check
    _
  $region7: #{squared_activation.1} parent=0 // pred_check_branch
    %15 = sbr.rel (0) target = $region9
  $region8: #{squared_activation.1} parent=0 // pred_region
    _
  $region9: #{squared_activation.1} parent=0 // pred_fallthru
    _
  // Predicated region
  $region10: #{squared_activation.1} parent=0 // pred_check
    _
  $region11: #{squared_activation.1} parent=0 // pred_check_branch
    %17 = sbr.rel (0) target = $region13
  $region12: #{squared_activation.1} parent=0 // pred_region
    _
  $region13: #{squared_activation.1} parent=0 // pred_fallthru
    _

</llo_original>
